<compile_context>
chip_gen: v7x
topology: tpu7x:2x2x1
jax: 0.10.0
libtpu: 0.0.40
codegen_flags: <defaults>
</compile_context>

<pallas_src>
import math

import jax
import jax.numpy as jnp
from jax.experimental import pallas as pl
from jax.experimental.pallas import tpu as pltpu

NEG_INF = -1e30
_LANE = 128
_SUBLANE = 8
_MAX_TILE_LC = 256


def _cdiv(a, b):
    return (a + b - 1) // b


def _round_up(a, b):
    return _cdiv(a, b) * b


def qanet_kernel(c_ref, q_ref, sbias_ref, w_ref, wr_ref, b_ref, out_ref):
    f32 = jnp.float32
    bf16 = jnp.bfloat16

    C = c_ref[0]                     # (Tlc, Dp)  bf16
    Q = q_ref[0]                     # (Lqp, Dp)  bf16
    sbias = sbias_ref[0]             # (1, Lqp)   f32: Q·w2 + (-1e30 on masked/padded)
    w1 = w_ref[0:1, :]               # (1, Dp)    f32
    w3 = w_ref[1:2, :]               # (1, Dp)    f32

    # Row (context) projection on the VPU/XLU (cheap, hidden under the MXU).
    c_proj = jnp.sum(C * w1, axis=-1, keepdims=True)             # (Tlc, 1) f32

    # Trilinear term: (C*w3) · Q^T as one bf16 MXU matmul, f32 accumulate.
    S = jax.lax.dot_general(                                     # (Tlc, Lqp) f32
        (C * w3).astype(bf16), Q,
        dimension_numbers=(((1,), (1,)), ((), ())),
        preferred_element_type=f32)
    S = S + c_proj + sbias

    # Softmax over the (padded) query axis.
    m = jnp.max(S, axis=-1, keepdims=True)
    e = jnp.exp(S - m)
    denom = jnp.sum(e, axis=-1, keepdims=True)
    S1 = (e * pl.reciprocal(denom, approx=True)).astype(bf16)    # (Tlc, Lqp)

    # A = S1 @ Q (bf16 MXU, f32 accumulate).
    A = jnp.dot(S1, Q, preferred_element_type=f32)               # (Tlc, Dp) f32

    # Resizer: out = A @ WrA + (C*A) @ WrB + b  (== concat([A, C*A]) @ Wr^T + b).
    out = jnp.dot(A.astype(bf16), wr_ref[0], preferred_element_type=f32)
    out = out + jnp.dot((C * A).astype(bf16), wr_ref[1],
                        preferred_element_type=f32)
    out = out + b_ref[...]
    out_ref[0] = out.astype(out_ref.dtype)


def my_qanet(C, Q, cmask, qmask, params):
    """cmask is accepted for API parity but (as in the PyTorch forward) unused."""
    del cmask
    B, Lc, D = C.shape
    _, Lq, _ = Q.shape
    f32 = jnp.float32
    bf16 = jnp.bfloat16

    Dp = _round_up(D, _LANE)
    Lq_p = _round_up(Lq, _LANE)
    n_lc_tiles = _cdiv(Lc, _MAX_TILE_LC)
    tile_lc = _round_up(_cdiv(Lc, n_lc_tiles), _SUBLANE)
    Lc_p = tile_lc * n_lc_tiles

    # Zero-pad activations to lane/sublane-dense shapes; bf16 halves input DMA
    # (matmuls accumulate in f32 inside the kernel).
    Cp = jnp.pad(C.astype(f32), ((0, 0), (0, Lc_p - Lc), (0, Dp - D))).astype(bf16)
    Qp = jnp.pad(Q.astype(f32), ((0, 0), (0, Lq_p - Lq), (0, Dp - D))).astype(bf16)

    # Trilinear weight rows [w_C, w_Q, w_CQ].
    w3d = params["w"].astype(f32).reshape(3, D)

    # Fuse the query-projection term and the additive mask into one f32 bias:
    #   sbias[b, j] = Q[b, j]·w_Q  +  (-1e30 if masked or padded else 0)
    q_proj = jnp.einsum("bld,d->bl", Q.astype(f32), w3d[1])          # (B, Lq)
    sbias = q_proj + qmask.astype(f32) * NEG_INF
    sbias = jnp.pad(sbias, ((0, 0), (0, Lq_p - Lq)),
                    constant_values=NEG_INF).reshape(B, 1, Lq_p)

    # In-kernel weight rows: [w_C, w_CQ], zero-padded on the feature axis.
    w13 = jnp.pad(jnp.stack([w3d[0], w3d[2]]), ((0, 0), (0, Dp - D)))  # (2, Dp) f32

    # Padded resizer weights: wr[0] acts on A, wr[1] on C*A.
    wr_t = params["wr"].T.astype(f32)                                 # (2D, D)
    wrA = jnp.zeros((Dp, Dp), f32).at[:D, :D].set(wr_t[:D])
    wrB = jnp.zeros((Dp, Dp), f32).at[:D, :D].set(wr_t[D:])
    wr_full = jnp.stack([wrA, wrB]).astype(bf16)                      # (2, Dp, Dp)

    bias = jnp.pad(params["b"].astype(f32).reshape(1, D), ((0, 0), (0, Dp - D)))

    out = pl.pallas_call(
        qanet_kernel,
        out_shape=jax.ShapeDtypeStruct((B, Lc_p, Dp), f32),
        grid=(B, n_lc_tiles),
        in_specs=[
            pl.BlockSpec((1, tile_lc, Dp), lambda b, t: (b, t, 0)),   # C (Lc-tiled)
            pl.BlockSpec((1, Lq_p, Dp), lambda b, t: (b, 0, 0)),      # Q
            pl.BlockSpec((1, 1, Lq_p), lambda b, t: (b, 0, 0)),       # fused q-bias
            pl.BlockSpec((2, Dp), lambda b, t: (0, 0)),               # [w_C, w_CQ]
            pl.BlockSpec((2, Dp, Dp), lambda b, t: (0, 0, 0)),        # resizer weights
            pl.BlockSpec((1, Dp), lambda b, t: (0, 0)),               # resizer bias
        ],
        out_specs=pl.BlockSpec((1, tile_lc, Dp), lambda b, t: (b, t, 0)),
        compiler_params=pltpu.CompilerParams(
            dimension_semantics=("parallel", "parallel"),
            vmem_limit_bytes=48 * 1024 * 1024,
        ),
    )(Cp, Qp, sbias, w13, wr_full, bias)

    return out[:, :Lc, :D]


def reference(C, Q, qmask, params):
    """Pure-JAX f32 transcription of the PyTorch forward (eval mode)."""
    B, Lc, D = C.shape
    Lq = Q.shape[1]
    Ct = jnp.broadcast_to(C[:, :, None, :], (B, Lc, Lq, D))
    Qt = jnp.broadcast_to(Q[:, None, :, :], (B, Lc, Lq, D))
    S = jnp.concatenate([Ct, Qt, Ct * Qt], axis=3) @ params["w"]
    qm = qmask[:, None, :]
    S = S * (1.0 - qm) + qm * NEG_INF
    S1 = jax.nn.softmax(S, axis=2)
    A = jnp.einsum("bij,bjd->bid", S1, Q)
    out = jnp.concatenate([A, C * A], axis=2)
    return out @ params["wr"].T + params["b"]


if __name__ == "__main__":
    B, Lc, Lq, D = 2, 16, 8, 32
    key = jax.random.PRNGKey(0)
    k1, k2, k3, k4, k5 = jax.random.split(key, 5)

    # CQAttention weight: uniform(-sqrt(1/D), sqrt(1/D)), shape (3D,)
    lim_w = math.sqrt(1.0 / D)
    # Linear(2D -> D): PyTorch default uniform(-1/sqrt(2D), 1/sqrt(2D))
    lim_l = 1.0 / math.sqrt(2 * D)
    params = {
        "w": jax.random.uniform(k1, (3 * D,), jnp.float32, -lim_w, lim_w),
        "wr": jax.random.uniform(k2, (D, 2 * D), jnp.float32, -lim_l, lim_l),
        "b": jax.random.uniform(k3, (D,), jnp.float32, -lim_l, lim_l),
    }

    C = jax.random.normal(k4, (B, Lc, D), jnp.float32)
    Q = jax.random.normal(k5, (B, Lq, D), jnp.float32)
    cmask = jnp.zeros((B, Lc), jnp.float32)                       # 1.0 = masked
    qmask = jnp.broadcast_to(
        (jnp.arange(Lq) >= Lq - 2).astype(jnp.float32)[None, :], (B, Lq)
    )

    out = my_qanet(C, Q, cmask, qmask, params)
    out = jax.block_until_ready(out)

    ref = reference(C, Q, qmask, params)
    assert out.shape == (B, Lc, D)
    # bf16 MXU operands with f32 accumulation -> looser tolerance than pure f32.
    assert jnp.allclose(out, ref, atol=2e-2, rtol=2e-2), "mismatch vs reference"
    print("KERNEL_OK")
</pallas_src>

<mosaic_0001>
module attributes {stable_mosaic.version = 11 : i64} {
  func.func @qanet_kernel(%arg0: i32, %arg1: i32, %arg2: memref<1x16x128xbf16, #tpu.memory_space<vmem>>, %arg3: memref<1x128x128xbf16, #tpu.memory_space<vmem>>, %arg4: memref<1x1x128xf32, #tpu.memory_space<vmem>>, %arg5: memref<2x128xf32, #tpu.memory_space<vmem>>, %arg6: memref<2x128x128xbf16, #tpu.memory_space<vmem>>, %arg7: memref<1x128xf32, #tpu.memory_space<vmem>>, %arg8: memref<1x16x128xf32, #tpu.memory_space<vmem>>) attributes {dimension_semantics = [#tpu.dimension_semantics<parallel>, #tpu.dimension_semantics<parallel>], iteration_bounds = array<i64: 2, 1>, scalar_prefetch = 0 : i64, scratch_operands = 0 : i64, tpu.core_type = #tpu.core_type<tc>, window_params = [{transform_indices = @transform_0, window_bounds = array<i64: 1, 16, 128>}, {transform_indices = @transform_1, window_bounds = array<i64: 1, 128, 128>}, {transform_indices = @transform_2, window_bounds = array<i64: 1, 1, 128>}, {pipeline_mode = #tpu.pipeline_mode<synchronous>, transform_indices = @transform_3, window_bounds = array<i64: 2, 128>}, {pipeline_mode = #tpu.pipeline_mode<synchronous>, transform_indices = @transform_4, window_bounds = array<i64: 2, 128, 128>}, {pipeline_mode = #tpu.pipeline_mode<synchronous>, transform_indices = @transform_5, window_bounds = array<i64: 1, 128>}, {transform_indices = @transform_6, window_bounds = array<i64: 1, 16, 128>}]} {
    %c0 = arith.constant 0 : index
    %c0_0 = arith.constant 0 : index
    %c0_1 = arith.constant 0 : index
    %0 = vector.load %arg2[%c0, %c0_0, %c0_1] : memref<1x16x128xbf16, #tpu.memory_space<vmem>>, vector<1x16x128xbf16>
    %1 = vector.shape_cast %0 : vector<1x16x128xbf16> to vector<16x128xbf16>
    %c0_2 = arith.constant 0 : index
    %c0_3 = arith.constant 0 : index
    %c0_4 = arith.constant 0 : index
    %2 = vector.load %arg3[%c0_2, %c0_3, %c0_4] : memref<1x128x128xbf16, #tpu.memory_space<vmem>>, vector<1x128x128xbf16>
    %3 = vector.shape_cast %2 : vector<1x128x128xbf16> to vector<128x128xbf16>
    %c0_5 = arith.constant 0 : index
    %c0_6 = arith.constant 0 : index
    %c0_7 = arith.constant 0 : index
    %4 = vector.load %arg4[%c0_5, %c0_6, %c0_7] : memref<1x1x128xf32, #tpu.memory_space<vmem>>, vector<1x1x128xf32>
    %5 = vector.shape_cast %4 : vector<1x1x128xf32> to vector<1x128xf32>
    %c0_8 = arith.constant 0 : index
    %c0_9 = arith.constant 0 : index
    %6 = vector.load %arg5[%c0_8, %c0_9] : memref<2x128xf32, #tpu.memory_space<vmem>>, vector<1x128xf32>
    %c1 = arith.constant 1 : index
    %c0_10 = arith.constant 0 : index
    %7 = vector.load %arg5[%c1, %c0_10] : memref<2x128xf32, #tpu.memory_space<vmem>>, vector<1x128xf32>
    %8 = arith.extf %1 : vector<16x128xbf16> to vector<16x128xf32>
    %9 = vector.broadcast %6 : vector<1x128xf32> to vector<16x128xf32>
    %10 = arith.mulf %8, %9 : vector<16x128xf32>
    %cst = arith.constant dense<0.000000e+00> : vector<16xf32>
    %11 = vector.multi_reduction <add>, %10, %cst [1] : vector<16x128xf32> to vector<16xf32>
    %12 = vector.shape_cast %11 : vector<16xf32> to vector<16x1xf32>
    %13 = arith.extf %1 : vector<16x128xbf16> to vector<16x128xf32>
    %14 = vector.broadcast %7 : vector<1x128xf32> to vector<16x128xf32>
    %15 = arith.mulf %13, %14 : vector<16x128xf32>
    %16 = arith.truncf %15 : vector<16x128xf32> to vector<16x128xbf16>
    %cst_11 = arith.constant dense<0.000000e+00> : vector<16x128xf32>
    %17 = tpu.matmul %16, %3, %cst_11 {dimension_numbers = #tpu.dot_dimension_numbers<[1], [1], [0], [0], [0, 0, 1, 0], [], []>} : vector<16x128xbf16>, vector<128x128xbf16>, vector<16x128xf32> -> vector<16x128xf32>
    %18 = vector.broadcast %12 : vector<16x1xf32> to vector<16x128xf32>
    %19 = arith.addf %17, %18 : vector<16x128xf32>
    %20 = vector.broadcast %5 : vector<1x128xf32> to vector<16x128xf32>
    %21 = arith.addf %19, %20 : vector<16x128xf32>
    %cst_12 = arith.constant dense<0xFF800000> : vector<16xf32>
    %22 = vector.multi_reduction <maximumf>, %21, %cst_12 [1] : vector<16x128xf32> to vector<16xf32>
    %23 = vector.shape_cast %22 : vector<16xf32> to vector<16x1xf32>
    %24 = vector.broadcast %23 : vector<16x1xf32> to vector<16x128xf32>
    %25 = arith.subf %21, %24 : vector<16x128xf32>
    %26 = math.exp %25 : vector<16x128xf32>
    %cst_13 = arith.constant dense<0.000000e+00> : vector<16xf32>
    %27 = vector.multi_reduction <add>, %26, %cst_13 [1] : vector<16x128xf32> to vector<16xf32>
    %28 = vector.shape_cast %27 : vector<16xf32> to vector<16x1xf32>
    %29 = tpu.reciprocal %28 {approx = true} : vector<16x1xf32> -> vector<16x1xf32>
    %30 = vector.broadcast %29 : vector<16x1xf32> to vector<16x128xf32>
    %31 = arith.mulf %26, %30 : vector<16x128xf32>
    %32 = arith.truncf %31 : vector<16x128xf32> to vector<16x128xbf16>
    %cst_14 = arith.constant dense<0.000000e+00> : vector<16x128xf32>
    %33 = tpu.matmul %32, %3, %cst_14 {dimension_numbers = #tpu.dot_dimension_numbers<[1], [0], [0], [1], [0, 0, 1, 1], [], []>} : vector<16x128xbf16>, vector<128x128xbf16>, vector<16x128xf32> -> vector<16x128xf32>
    %34 = arith.truncf %33 : vector<16x128xf32> to vector<16x128xbf16>
    %c0_15 = arith.constant 0 : index
    %c0_16 = arith.constant 0 : index
    %c0_17 = arith.constant 0 : index
    %35 = vector.load %arg6[%c0_15, %c0_16, %c0_17] : memref<2x128x128xbf16, #tpu.memory_space<vmem>>, vector<1x128x128xbf16>
    %36 = vector.shape_cast %35 : vector<1x128x128xbf16> to vector<128x128xbf16>
    %cst_18 = arith.constant dense<0.000000e+00> : vector<16x128xf32>
    %37 = tpu.matmul %34, %36, %cst_18 {dimension_numbers = #tpu.dot_dimension_numbers<[1], [0], [0], [1], [0, 0, 1, 1], [], []>} : vector<16x128xbf16>, vector<128x128xbf16>, vector<16x128xf32> -> vector<16x128xf32>
    %38 = arith.extf %1 : vector<16x128xbf16> to vector<16x128xf32>
    %39 = arith.mulf %38, %33 : vector<16x128xf32>
    %40 = arith.truncf %39 : vector<16x128xf32> to vector<16x128xbf16>
    %c1_19 = arith.constant 1 : index
    %c0_20 = arith.constant 0 : index
    %c0_21 = arith.constant 0 : index
    %41 = vector.load %arg6[%c1_19, %c0_20, %c0_21] : memref<2x128x128xbf16, #tpu.memory_space<vmem>>, vector<1x128x128xbf16>
    %42 = vector.shape_cast %41 : vector<1x128x128xbf16> to vector<128x128xbf16>
    %cst_22 = arith.constant dense<0.000000e+00> : vector<16x128xf32>
    %43 = tpu.matmul %40, %42, %cst_22 {dimension_numbers = #tpu.dot_dimension_numbers<[1], [0], [0], [1], [0, 0, 1, 1], [], []>} : vector<16x128xbf16>, vector<128x128xbf16>, vector<16x128xf32> -> vector<16x128xf32>
    %44 = arith.addf %37, %43 : vector<16x128xf32>
    %c0_23 = arith.constant 0 : index
    %c0_24 = arith.constant 0 : index
    %45 = vector.load %arg7[%c0_23, %c0_24] : memref<1x128xf32, #tpu.memory_space<vmem>>, vector<1x128xf32>
    %46 = vector.broadcast %45 : vector<1x128xf32> to vector<16x128xf32>
    %47 = arith.addf %44, %46 : vector<16x128xf32>
    %c0_25 = arith.constant 0 : index
    %c0_26 = arith.constant 0 : index
    %c0_27 = arith.constant 0 : index
    %48 = vector.load %arg8[%c0_25, %c0_26, %c0_27] : memref<1x16x128xf32, #tpu.memory_space<vmem>>, vector<1x16x128xf32>
    %49 = vector.shape_cast %48 : vector<1x16x128xf32> to vector<16x128xf32>
    %50 = vector.shape_cast %47 : vector<16x128xf32> to vector<1x16x128xf32>
    tpu.vector_store %arg8[%c0_25, %c0_26, %c0_27], %50 {strides = array<i32>} : memref<1x16x128xf32, #tpu.memory_space<vmem>>, vector<1x16x128xf32>,
    return
  }
  func.func @transform_0(%arg0: i32, %arg1: i32) -> (i32, i32, i32) {
    %c0_i32 = arith.constant 0 : i32
    %c0_i32_0 = arith.constant 0 : i32
    return %arg0, %arg1, %c0_i32 : i32, i32, i32
  }
  func.func @transform_1(%arg0: i32, %arg1: i32) -> (i32, i32, i32) {
    %c0_i32 = arith.constant 0 : i32
    %c0_i32_0 = arith.constant 0 : i32
    %c0_i32_1 = arith.constant 0 : i32
    return %arg0, %c0_i32, %c0_i32_0 : i32, i32, i32
  }
  func.func @transform_2(%arg0: i32, %arg1: i32) -> (i32, i32, i32) {
    %c0_i32 = arith.constant 0 : i32
    %c0_i32_0 = arith.constant 0 : i32
    %c0_i32_1 = arith.constant 0 : i32
    return %arg0, %c0_i32, %c0_i32_0 : i32, i32, i32
  }
  func.func @transform_3(%arg0: i32, %arg1: i32) -> (i32, i32) {
    %c0_i32 = arith.constant 0 : i32
    %c0_i32_0 = arith.constant 0 : i32
    %c0_i32_1 = arith.constant 0 : i32
    return %c0_i32, %c0_i32_0 : i32, i32
  }
  func.func @transform_4(%arg0: i32, %arg1: i32) -> (i32, i32, i32) {
    %c0_i32 = arith.constant 0 : i32
    %c0_i32_0 = arith.constant 0 : i32
    %c0_i32_1 = arith.constant 0 : i32
    %c0_i32_2 = arith.constant 0 : i32
    return %c0_i32, %c0_i32_0, %c0_i32_1 : i32, i32, i32
  }
  func.func @transform_5(%arg0: i32, %arg1: i32) -> (i32, i32) {
    %c0_i32 = arith.constant 0 : i32
    %c0_i32_0 = arith.constant 0 : i32
    %c0_i32_1 = arith.constant 0 : i32
    return %c0_i32, %c0_i32_0 : i32, i32
  }
  func.func @transform_6(%arg0: i32, %arg1: i32) -> (i32, i32, i32) {
    %c0_i32 = arith.constant 0 : i32
    %c0_i32_0 = arith.constant 0 : i32
    return %arg0, %arg1, %c0_i32 : i32, i32, i32
  }
}

</mosaic_0001>

<llo_original>
// kernel: tpu_custom_call.1
$region0: #{tpu_custom_call.1}
  #allocation0 [shape = 'u32[]', space=smem, size = 0x4, offset = 0x4, fixed_abs, tag = 'smem constant byte address 0x4 - core index']
  #allocation1 [shape = 'u32[144,128]{1,0:T(1,128)}', space=vmem, size = 0x12000, scoped, tag = 'internal scratch']
  %s0 = inlined_call_operand.hbm [shape: bf16[2,16,128], index: 0, kind: input, shape index: {}]
  %s1 = inlined_call_operand.hbm [shape: bf16[2,128,128], index: 1, kind: input, shape index: {}]
  %s2 = inlined_call_operand.vmem [shape: f32[2,1,128], index: 2, kind: input, shape index: {}]
  %s3 = inlined_call_operand.vmem [shape: f32[2,128], index: 3, kind: input, shape index: {}]
  %s4 = inlined_call_operand.hbm [shape: bf16[2,128,128], index: 4, kind: input, shape index: {}]
  %s5 = inlined_call_operand.vmem [shape: f32[1,128], index: 5, kind: input, shape index: {}]
  %s6 = inlined_call_operand.hbm [shape: f32[2,16,128], index: 6, kind: output, shape index: {}]
  %s7 = sld [smem:[#allocation0]]
  $region69: #{tpu_custom_call.1} parent=0
    _
  %s9 = ssub.s32 1, %s7
  %s10 = scalar_select 0, %s9, %s7
  $region1: #{tpu_custom_call.1} parent=0
    #allocation2 [shape = 'u8[8192]{0}', space=vmem, size = 0x2000, scoped, tag = 'input window, operand 0']
    #allocation3 [shape = 's32[2]{0}', space=sflag, size = 0x8, scoped, tag = 'scoped memory for tpu_custom_call.1']
    #allocation4 [shape = 's32[2]{0}', space=sflag, size = 0x8, scoped, tag = 'scoped memory for tpu_custom_call.1']
    #allocation5 [shape = 'u8[65536]{0}', space=vmem, size = 0x10000, scoped, tag = 'input window, operand 1']
    #allocation6 [shape = 's32[2]{0}', space=sflag, size = 0x8, scoped, tag = 'scoped memory for tpu_custom_call.1']
    #allocation7 [shape = 'u8[65536]{0}', space=vmem, size = 0x10000, scoped, tag = 'input window, operand 4, single buffered']
    #allocation8 [shape = 'u8[16384]{0}', space=vmem, size = 0x4000, scoped, tag = 'output window, operand 0']
    %11 = vsyncpa [#allocation3], 0
    %s12 = scalar_lea.sflag [#allocation3], 1
    %13 = vsyncpa %s12, 0
    %14 = vsyncpa [#allocation6], 0
    %s15 = scalar_lea.sflag [#allocation6], 1
    %16 = vsyncpa %s15, 0
    %17 = vsyncpa [#allocation4], 0
    %s18 = scalar_lea.sflag [#allocation4], 1
    %19 = vsyncpa %s18, 0
    loop: start=0, step=1, limit=4
    $region2: #{tpu_custom_call.1} parent=1 // loop_pre_header
      _
    $region3: #{tpu_custom_call.1} parent=1 // loop_header
      %s21 = sphi 0, %s25
      %p22 = scmp.ge.s32.totalorder %s21, 4
      %s28 = sphi 0, %s40
      %s29 = sphi 0, %s36
      %s30 = sphi 0, %s28
      %s31 = sphi 0, %s29
      %s32 = sphi 0, %s30
      %s33 = sphi 0, %s31
      %s45 = sphi 0, %s47
      %s48 = sphi 0, %s45
      %s49 = sphi 0, %s48
      %s65 = sphi 0, %s49
      %s71 = sphi 0, %s73
      %s74 = sphi 0, %s71
      %s75 = sphi 0, %s74
      %s91 = sphi 0, %s75
      %s97 = sphi 0, %s99
      %s100 = sphi 0, %s97
      %s101 = sphi 0, %s100
      %s117 = sphi 0, %s101
      %s121 = sphi 0, %s121
      %s123 = sphi 0, %s121
      %s124 = sphi 0, %s123
      %s138 = sphi 0, %s124
      %s142 = sphi 0, %s142
      %s144 = sphi 0, %s142
      %s145 = sphi 0, %s144
      %s159 = sphi 0, %s145
      %s163 = sphi 0, %s163
      %s165 = sphi 0, %s163
      %s166 = sphi 0, %s165
      %s180 = sphi 0, %s166
      %s188 = sphi 0, %s190
      %s191 = sphi 0, %s188
      %s192 = sphi 0, %s191
      %s208 = sphi 0, %s192
    $region4: #{tpu_custom_call.1} parent=1 // loop_header_branch
      %24 = sbr.rel (%p22) target = $region8
    $region5: #{tpu_custom_call.1} parent=1 // loop_body
      %s26 = ssub.s32 %s21, 1
      %s27 = ssub.s32 %s21, 2
      %s34 = sadd.s32 1, %s29
      %p35 = scmp.ge.s32.totalorder %s34, 1
      %s36 = scalar_select %p35, 0, %s34
      %s37 = sadd.s32 1, %s28
      %s38 = scalar_select %p35, %s37, %s28
      %p39 = scmp.ge.s32.totalorder %s38, 2
      %s40 = scalar_select %p39, 0, %s38
      %s41 = ssub.s32 %s28, %s40
      %s42 = ssub.s32 %s29, %s36
      %s43 = sor.u32 %s41, %s42
      %p44 = scmp.eq.s32.totalorder %s43, 0
      %s46 = sadd.s32 %s45, 1
      %s47 = scalar_select %p44, %s45, %s46
      %p50 = pneg %p44
      %p51 = scmp.eq.s32.totalorder %s21, 1
      %p52 = por %p50, %p51
      %p53 = scmp.ne.s32.totalorder %s45, %s48
      %p54 = scmp.eq.s32.totalorder %s21, 0
      %p55 = por %p53, %p54
      %p56 = scmp.ne.s32.totalorder %s45, %s48
      %p57 = scmp.eq.s32.totalorder %s26, 1
      %p58 = por %p56, %p57
      %p59 = scmp.ne.s32.totalorder %s48, %s49
      %p60 = scmp.eq.s32.totalorder %s26, 0
      %p61 = por %p59, %p60
      %p62 = scmp.ne.s32.totalorder %s48, %s49
      %p63 = scmp.eq.s32.totalorder %s27, 1
      %p64 = por %p62, %p63
      %p66 = scmp.ne.s32.totalorder %s49, %s65
      %p67 = scmp.eq.s32.totalorder %s27, 0
      %p68 = por %p66, %p67
      %s69 = ssub.s32 %s28, %s40
      %p70 = scmp.eq.s32.totalorder %s69, 0
      %s72 = sadd.s32 %s71, 1
      %s73 = scalar_select %p70, %s71, %s72
      %p76 = pneg %p70
      %p77 = scmp.eq.s32.totalorder %s21, 1
      %p78 = por %p76, %p77
      %p79 = scmp.ne.s32.totalorder %s71, %s74
      %p80 = scmp.eq.s32.totalorder %s21, 0
      %p81 = por %p79, %p80
      %p82 = scmp.ne.s32.totalorder %s71, %s74
      %p83 = scmp.eq.s32.totalorder %s26, 1
      %p84 = por %p82, %p83
      %p85 = scmp.ne.s32.totalorder %s74, %s75
      %p86 = scmp.eq.s32.totalorder %s26, 0
      %p87 = por %p85, %p86
      %p88 = scmp.ne.s32.totalorder %s74, %s75
      %p89 = scmp.eq.s32.totalorder %s27, 1
      %p90 = por %p88, %p89
      %p92 = scmp.ne.s32.totalorder %s75, %s91
      %p93 = scmp.eq.s32.totalorder %s27, 0
      %p94 = por %p92, %p93
      %s95 = ssub.s32 %s28, %s40
      %p96 = scmp.eq.s32.totalorder %s95, 0
      %s98 = sadd.s32 %s97, 1
      %s99 = scalar_select %p96, %s97, %s98
      %p102 = pneg %p96
      %p103 = scmp.eq.s32.totalorder %s21, 1
      %p104 = por %p102, %p103
      %p105 = scmp.ne.s32.totalorder %s97, %s100
      %p106 = scmp.eq.s32.totalorder %s21, 0
      %p107 = por %p105, %p106
      %p108 = scmp.ne.s32.totalorder %s97, %s100
      %p109 = scmp.eq.s32.totalorder %s26, 1
      %p110 = por %p108, %p109
      %p111 = scmp.ne.s32.totalorder %s100, %s101
      %p112 = scmp.eq.s32.totalorder %s26, 0
      %p113 = por %p111, %p112
      %p114 = scmp.ne.s32.totalorder %s100, %s101
      %p115 = scmp.eq.s32.totalorder %s27, 1
      %p116 = por %p114, %p115
      %p118 = scmp.ne.s32.totalorder %s101, %s117
      %p119 = scmp.eq.s32.totalorder %s27, 0
      %p120 = por %p118, %p119
      %s122 = sadd.s32 %s121, 1
      %p125 = scmp.eq.s32.totalorder %s21, 1
      %p126 = scmp.ne.s32.totalorder %s121, %s123
      %p127 = scmp.eq.s32.totalorder %s21, 0
      %p128 = por %p126, %p127
      %p129 = scmp.ne.s32.totalorder %s121, %s123
      %p130 = scmp.eq.s32.totalorder %s26, 1
      %p131 = por %p129, %p130
      %p132 = scmp.ne.s32.totalorder %s123, %s124
      %p133 = scmp.eq.s32.totalorder %s26, 0
      %p134 = por %p132, %p133
      %p135 = scmp.ne.s32.totalorder %s123, %s124
      %p136 = scmp.eq.s32.totalorder %s27, 1
      %p137 = por %p135, %p136
      %p139 = scmp.ne.s32.totalorder %s124, %s138
      %p140 = scmp.eq.s32.totalorder %s27, 0
      %p141 = por %p139, %p140
      %s143 = sadd.s32 %s142, 1
      %p146 = scmp.eq.s32.totalorder %s21, 1
      %p147 = scmp.ne.s32.totalorder %s142, %s144
      %p148 = scmp.eq.s32.totalorder %s21, 0
      %p149 = por %p147, %p148
      %p150 = scmp.ne.s32.totalorder %s142, %s144
      %p151 = scmp.eq.s32.totalorder %s26, 1
      %p152 = por %p150, %p151
      %p153 = scmp.ne.s32.totalorder %s144, %s145
      %p154 = scmp.eq.s32.totalorder %s26, 0
      %p155 = por %p153, %p154
      %p156 = scmp.ne.s32.totalorder %s144, %s145
      %p157 = scmp.eq.s32.totalorder %s27, 1
      %p158 = por %p156, %p157
      %p160 = scmp.ne.s32.totalorder %s145, %s159
      %p161 = scmp.eq.s32.totalorder %s27, 0
      %p162 = por %p160, %p161
      %s164 = sadd.s32 %s163, 1
      %p167 = scmp.eq.s32.totalorder %s21, 1
      %p168 = scmp.ne.s32.totalorder %s163, %s165
      %p169 = scmp.eq.s32.totalorder %s21, 0
      %p170 = por %p168, %p169
      %p171 = scmp.ne.s32.totalorder %s163, %s165
      %p172 = scmp.eq.s32.totalorder %s26, 1
      %p173 = por %p171, %p172
      %p174 = scmp.ne.s32.totalorder %s165, %s166
      %p175 = scmp.eq.s32.totalorder %s26, 0
      %p176 = por %p174, %p175
      %p177 = scmp.ne.s32.totalorder %s165, %s166
      %p178 = scmp.eq.s32.totalorder %s27, 1
      %p179 = por %p177, %p178
      %p181 = scmp.ne.s32.totalorder %s166, %s180
      %p182 = scmp.eq.s32.totalorder %s27, 0
      %p183 = por %p181, %p182
      %s184 = ssub.s32 %s28, %s40
      %s185 = ssub.s32 %s29, %s36
      %s186 = sor.u32 %s184, %s185
      %p187 = scmp.eq.s32.totalorder %s186, 0
      %s189 = sadd.s32 %s188, 1
      %s190 = scalar_select %p187, %s188, %s189
      %p193 = pneg %p187
      %p194 = scmp.eq.s32.totalorder %s21, 1
      %p195 = por %p193, %p194
      %p196 = scmp.ne.s32.totalorder %s188, %s191
      %p197 = scmp.eq.s32.totalorder %s21, 0
      %p198 = por %p196, %p197
      %p199 = scmp.ne.s32.totalorder %s188, %s191
      %p200 = scmp.eq.s32.totalorder %s26, 1
      %p201 = por %p199, %p200
      %p202 = scmp.ne.s32.totalorder %s191, %s192
      %p203 = scmp.eq.s32.totalorder %s26, 0
      %p204 = por %p202, %p203
      %p205 = scmp.ne.s32.totalorder %s191, %s192
      %p206 = scmp.eq.s32.totalorder %s27, 1
      %p207 = por %p205, %p206
      %p209 = scmp.ne.s32.totalorder %s192, %s208
      %p210 = scmp.eq.s32.totalorder %s27, 0
      %p211 = por %p209, %p210
      %p212 = scmp.le.s32.totalorder 1, %s21
      %p213 = scmp.lt.s32.totalorder %s21, 3
      %p214 = pnand %p212, %p213
      %p215 = pneg %p214
      // Predicated region
      $region9: #{tpu_custom_call.1} parent=5 // pred_check
        _
      $region10: #{tpu_custom_call.1} parent=5 // pred_check_branch
        %217 = sbr.rel (%p214) target = $region12
      $region11: #{tpu_custom_call.1} parent=5 // pred_region
        %s218 = ssub.s32 %s21, 1
        // Predicated region
        $region13: #{tpu_custom_call.1} parent=11 // pred_check
          %p219 = pneg %p134
        $region14: #{tpu_custom_call.1} parent=11 // pred_check_branch
          %221 = sbr.rel (%p219) target = $region16
        $region15: #{tpu_custom_call.1} parent=11 // pred_region
          _
        $region16: #{tpu_custom_call.1} parent=11 // pred_fallthru
          _
        // Predicated region
        $region17: #{tpu_custom_call.1} parent=11 // pred_check
          %p222 = pneg %p155
        $region18: #{tpu_custom_call.1} parent=11 // pred_check_branch
          %224 = sbr.rel (%p222) target = $region20
        $region19: #{tpu_custom_call.1} parent=11 // pred_region
          %s226 = ssub.s32 2048, 2048
          %227 = vsyncadd [#allocation6], %s226
          %s228 = sshll.u32 [#allocation7], 4
          %s229 = int_to_ptr.vmem [resolvable:$true] %s228
          %234 = dma.hbm_to_vmem [thread:$0]  %s4, 2048, %s229, [#allocation6], 64, 64, 4
        $region20: #{tpu_custom_call.1} parent=11 // pred_fallthru
          _
        // Predicated region
        $region21: #{tpu_custom_call.1} parent=11 // pred_check
          %p235 = pneg %p176
        $region22: #{tpu_custom_call.1} parent=11 // pred_check_branch
          %237 = sbr.rel (%p235) target = $region24
        $region23: #{tpu_custom_call.1} parent=11 // pred_region
          _
        $region24: #{tpu_custom_call.1} parent=11 // pred_fallthru
          _
      $region12: #{tpu_custom_call.1} parent=5 // pred_fallthru
        _
      %p238 = scmp.lt.s32.totalorder %s21, 2
      // Predicated region
      $region25: #{tpu_custom_call.1} parent=5 // pred_check
        %p239 = pneg %p238
      $region26: #{tpu_custom_call.1} parent=5 // pred_check_branch
        %241 = sbr.rel (%p239) target = $region28
      $region27: #{tpu_custom_call.1} parent=5 // pred_region
        // Predicated region
        $region29: #{tpu_custom_call.1} parent=27 // pred_check
          %p242 = pneg %p55
        $region30: #{tpu_custom_call.1} parent=27 // pred_check_branch
          %244 = sbr.rel (%p242) target = $region32
        $region31: #{tpu_custom_call.1} parent=27 // pred_region
          %s245 = sand.u32 %s45, 1
          %s246 = scalar_lea.sflag [#allocation3], %s245
          %s247 = sand.u32 %s45, 1
          %s248 = smul.addr %s247, 8
          %s249 = scalar_lea.vmem [#allocation2], %s248
          %s250 = smul.u32 2, %s29
          %s252 = ssub.s32 128, 128
          %253 = vsyncadd %s246, %s252
          %s254 = smul.addr %s28, 2
          %s255 = sadd.s32 %s250, %s254
          %s256 = smul.addr %s255, 64
          %s257 = scalar_lea.hbm %s0, %s256
          %s258 = sshll.u32 %s249, 4
          %s259 = int_to_ptr.vmem [resolvable:$true] %s258
          %264 = dma.hbm_to_vmem [thread:$0]  %s257, 128, %s259, %s246, 64, 64, 4
        $region32: #{tpu_custom_call.1} parent=27 // pred_fallthru
          _
        // Predicated region
        $region33: #{tpu_custom_call.1} parent=27 // pred_check
          %p265 = pneg %p81
        $region34: #{tpu_custom_call.1} parent=27 // pred_check_branch
          %267 = sbr.rel (%p265) target = $region36
        $region35: #{tpu_custom_call.1} parent=27 // pred_region
          %s268 = sand.u32 %s21, 1
          %s269 = scalar_lea.sflag [#allocation6], %s268
          %s270 = sand.u32 %s71, 1
          %s271 = smul.addr %s270, 64
          %s272 = scalar_lea.vmem [#allocation5], %s271
          %s274 = ssub.s32 1024, 1024
          %275 = vsyncadd %s269, %s274
          %s276 = smul.addr %s28, 16
          %s277 = smul.addr %s276, 64
          %s278 = scalar_lea.hbm %s1, %s277
          %s279 = sshll.u32 %s272, 4
          %s280 = int_to_ptr.vmem [resolvable:$true] %s279
          %285 = dma.hbm_to_vmem [thread:$0]  %s278, 1024, %s280, %s269, 64, 64, 4
        $region36: #{tpu_custom_call.1} parent=27 // pred_fallthru
          _
        // Predicated region
        $region37: #{tpu_custom_call.1} parent=27 // pred_check
          %p286 = pneg %p107
        $region38: #{tpu_custom_call.1} parent=27 // pred_check_branch
          %288 = sbr.rel (%p286) target = $region40
        $region39: #{tpu_custom_call.1} parent=27 // pred_region
          %p289 = scmp.lt.s32.totalorder %s28, 1
          %s290 = scalar_select %p289, %s28, 1
          %s291 = scalar_lea.vmem %s2, %s290
        $region40: #{tpu_custom_call.1} parent=27 // pred_fallthru
          _
      $region28: #{tpu_custom_call.1} parent=5 // pred_fallthru
        _
      %p292 = scmp.le.s32.totalorder 1, %s21
      %p293 = scmp.lt.s32.totalorder %s21, 3
      %p294 = pnand %p292, %p293
      %p295 = pneg %p294
      // Predicated region
      $region41: #{tpu_custom_call.1} parent=5 // pred_check
        _
      $region42: #{tpu_custom_call.1} parent=5 // pred_check_branch
        %297 = sbr.rel (%p294) target = $region44
      $region43: #{tpu_custom_call.1} parent=5 // pred_region
        %s298 = ssub.s32 %s21, 1
        %s299 = sand.u32 %s48, 1
        %s300 = scalar_lea.sflag [#allocation3], %s299
        %s301 = sand.u32 %s48, 1
        %s302 = smul.addr %s301, 8
        %s303 = scalar_lea.vmem [#allocation2], %s302
        // Predicated region
        $region45: #{tpu_custom_call.1} parent=43 // pred_check
          %p304 = pneg %p61
        $region46: #{tpu_custom_call.1} parent=43 // pred_check_branch
          %306 = sbr.rel (%p304) target = $region48
        $region47: #{tpu_custom_call.1} parent=43 // pred_region
          %307 = dma.done %s300, 128
        $region48: #{tpu_custom_call.1} parent=43 // pred_fallthru
          _
        %s308 = sand.u32 %s26, 1
        %s309 = scalar_lea.sflag [#allocation6], %s308
        %s310 = sand.u32 %s74, 1
        %s311 = smul.addr %s310, 64
        %s312 = scalar_lea.vmem [#allocation5], %s311
        // Predicated region
        $region49: #{tpu_custom_call.1} parent=43 // pred_check
          %p313 = pneg %p87
        $region50: #{tpu_custom_call.1} parent=43 // pred_check_branch
          %315 = sbr.rel (%p313) target = $region52
        $region51: #{tpu_custom_call.1} parent=43 // pred_region
          %316 = dma.done %s309, 1024
        $region52: #{tpu_custom_call.1} parent=43 // pred_fallthru
          _
        // Predicated region
        $region53: #{tpu_custom_call.1} parent=43 // pred_check
          %p317 = pneg %p155
        $region54: #{tpu_custom_call.1} parent=43 // pred_check_branch
          %319 = sbr.rel (%p317) target = $region56
        $region55: #{tpu_custom_call.1} parent=43 // pred_region
          %320 = dma.done [#allocation6], 2048
        $region56: #{tpu_custom_call.1} parent=43 // pred_fallthru
          _
        %s321 = sand.u32 %s48, 1
        %s322 = scalar_lea.sflag [#allocation3], %s321
        %s323 = sand.u32 %s48, 1
        %s324 = smul.addr %s323, 8
        %s325 = scalar_lea.vmem [#allocation2], %s324
        %p326 = pneg %p61
        %p327 = pneg %p58
        %s328 = sand.u32 %s26, 1
        %s329 = scalar_lea.sflag [#allocation6], %s328
        %s330 = sand.u32 %s74, 1
        %s331 = smul.addr %s330, 64
        %s332 = scalar_lea.vmem [#allocation5], %s331
        %p333 = pneg %p87
        %p334 = pneg %p84
        %p335 = scmp.lt.s32.totalorder %s30, 1
        %s336 = scalar_select %p335, %s30, 1
        %s337 = scalar_lea.vmem %s2, %s336
        %p338 = pneg %p113
        %p339 = pneg %p110
        %p340 = pneg %p134
        %p341 = pneg %p131
        %p342 = pneg %p155
        %p343 = pneg %p152
        %p344 = pneg %p176
        %p345 = pneg %p173
        %p346 = pneg %p204
        %p347 = pneg %p201
        %s348 = sand.u32 %s191, 1
        %s349 = scalar_lea.sflag [#allocation4], %s348
        %s350 = sand.u32 %s191, 1
        %s351 = smul.addr %s350, 16
        %s352 = scalar_lea.vmem [#allocation8], %s351
        %s353 = smul.u32 2, %s31
        %p354 = scmp.lt.s32.totalorder %s30, 1
        %s355 = scalar_select %p354, %s30, 1
        %s356 = scalar_lea.vmem %s2, %s355
        %s357 = smul.u32 2, %s31
        %v359 = vld [vmem:[%s303] sm:$0xf]
        %v360 = vld [vmem:[%s303 + $0x4] sm:$0xf]
        %v361 = vld [vmem:[%s312] sm:$0xf]
        %v362 = vld [vmem:[%s312 + $0x4] sm:$0xf]
        %v363 = vld [vmem:[%s312 + $0x8] sm:$0xf]
        %v364 = vld [vmem:[%s312 + $0xc] sm:$0xf]
        %v365 = vld [vmem:[%s312 + $0x10] sm:$0xf]
        %v366 = vld [vmem:[%s312 + $0x14] sm:$0xf]
        %v367 = vld [vmem:[%s312 + $0x18] sm:$0xf]
        %v368 = vld [vmem:[%s312 + $0x1c] sm:$0xf]
        %v369 = vld [vmem:[%s312 + $0x20] sm:$0xf]
        %v370 = vld [vmem:[%s312 + $0x24] sm:$0xf]
        %v371 = vld [vmem:[%s312 + $0x28] sm:$0xf]
        %v372 = vld [vmem:[%s312 + $0x2c] sm:$0xf]
        %v373 = vld [vmem:[%s312 + $0x30] sm:$0xf]
        %v374 = vld [vmem:[%s312 + $0x34] sm:$0xf]
        %v375 = vld [vmem:[%s312 + $0x38] sm:$0xf]
        %v376 = vld [vmem:[%s312 + $0x3c] sm:$0xf]
        %v377 = vld [vmem:[%s356] sm:$0x1]
        %v378 = vld [vmem:[%s3] sm:$0x1]
        %v379 = vld [vmem:[%s3 + $0x1] sm:$0x1]
        %v380 = vunpack.c.l.bf16 %v359
        %v381 = vunpack.c.l.bf16 %v360
        %v382 = vlaneseq
        %v383 = vshrl.u32 %v382, 7
        %v384 = vsub.s32 0, %v383
        %v385 = vrot.slane %v378, %v384
        %v386 = vmul.f32 %v380, %v385
        %v387 = vmul.f32 %v381, %v385
        %388 = vadd.xlane.f32.xlu0 %v386
        %v389 = vpop.xlane.xlu0 %388
        %390 = vadd.xlane.f32.xlu0 %v387
        %v391 = vpop.xlane.xlu0 %390
        %v392 = vlaneseq
        %v393 = vshrl.u32 %v392, 7
        %v394 = vsub.s32 0, %v393
        %v395 = vrot.slane %v379, %v394
        %v396 = vmul.f32 %v380, %v395
        %v397 = vmul.f32 %v381, %v395
        %v398 = vpack.c.bf16 %v397, %v396
        %v415 = vunpack.c.l.b16 %v361
        %v416 = vunpack.c.l.b16 %v362
        %v417 = vunpack.c.l.b16 %v363
        %v418 = vunpack.c.l.b16 %v364
        %v419 = vunpack.c.l.b16 %v365
        %v420 = vunpack.c.l.b16 %v366
        %v421 = vunpack.c.l.b16 %v367
        %v422 = vunpack.c.l.b16 %v368
        %v423 = vunpack.c.l.b16 %v369
        %v424 = vunpack.c.l.b16 %v370
        %v425 = vunpack.c.l.b16 %v371
        %v426 = vunpack.c.l.b16 %v372
        %v427 = vunpack.c.l.b16 %v373
        %v428 = vunpack.c.l.b16 %v374
        %v429 = vunpack.c.l.b16 %v375
        %v430 = vunpack.c.l.b16 %v376
        %v431 = vpack.c.b16 %v416, %v415
        %v432 = vpack.c.b16 %v418, %v417
        %v433 = vpack.c.b16 %v420, %v419
        %v434 = vpack.c.b16 %v422, %v421
        %v435 = vpack.c.b16 %v424, %v423
        %v436 = vpack.c.b16 %v426, %v425
        %v437 = vpack.c.b16 %v428, %v427
        %v438 = vpack.c.b16 %v430, %v429
        %447 = vmatprep.subr.bf16.mxu0 0
        %448 = vmatpush1.bf16.xpose.msra.mxu0 %v431
        %449 = vmatprep.subr.bf16.mxu0 0
        %450 = vmatpush1.bf16.xpose.msra.mxu0 %v432
        %451 = vmatprep.subr.bf16.mxu0 0
        %452 = vmatpush1.bf16.xpose.msra.mxu0 %v433
        %453 = vmatprep.subr.bf16.mxu0 0
        %454 = vmatpush1.bf16.xpose.msra.mxu0 %v434
        %455 = vmatprep.subr.bf16.mxu0 0
        %456 = vmatpush1.bf16.xpose.msra.mxu0 %v435
        %457 = vmatprep.subr.bf16.mxu0 0
        %458 = vmatpush1.bf16.xpose.msra.mxu0 %v436
        %459 = vmatprep.subr.bf16.mxu0 0
        %460 = vmatpush1.bf16.xpose.msra.mxu0 %v437
        %461 = vmatprep.subr.bf16.mxu0 0
        %462 = vmatpush1.bf16.xpose.msra.mxu0 %v438
        %463 = vmatprep.subr.bf16.mxu0 0
        %464 = vmatpush1.bf16.xpose.msra.mxu0 0
        %465 = vmatprep.subr.bf16.mxu0 0
        %466 = vmatpush1.bf16.xpose.msra.mxu0 0
        %467 = vmatprep.subr.bf16.mxu0 0
        %468 = vmatpush1.bf16.xpose.msra.mxu0 0
        %469 = vmatprep.subr.bf16.mxu0 0
        %470 = vmatpush1.bf16.xpose.msra.mxu0 0
        %471 = vmatprep.subr.bf16.mxu0 0
        %472 = vmatpush1.bf16.xpose.msra.mxu0 0
        %473 = vmatprep.subr.bf16.mxu0 0
        %474 = vmatpush1.bf16.xpose.msra.mxu0 0
        %475 = vmatprep.subr.bf16.mxu0 0
        %476 = vmatpush1.bf16.xpose.msra.mxu0 0
        %477 = vmatprep.subr.bf16.mxu0 0
        %478 = vmatpush1.bf16.xpose.msra.mxu0 0
        %479 = vmatprep.mubr.bf16.mxu0 0
        %480 = vmatmul.mubr.bf16.gmra.mrb[0].mxu0 %v398
        %v481 = vpop.f32.mrb[0].mxu0
        %v482 = vadd.f32 %v389, %v481
        %v483 = vpop.f32.mrb[0].mxu0
        %v484 = vpop.f32.mrb[0].mxu0
        %v485 = vadd.f32 %v391, %v484
        %v486 = vpop.f32.mrb[0].mxu0
        %487 = vdwg.mxu0
        %v489 = vlaneseq
        %v490 = vshrl.u32 %v489, 7
        %v491 = vsub.s32 0, %v490
        %v492 = vrot.slane %v377, %v491
        %v494 = vadd.f32 %v482, %v492
        %v495 = vadd.f32 %v485, %v492
        %496 = vmax.xlane.f32.xlu0 %v494
        %v497 = vpop.xlane.xlu0 %496
        %498 = vmax.xlane.f32.xlu0 %v495
        %v499 = vpop.xlane.xlu0 %498
        %v500 = vsub.f32 %v494, %v497
        %v501 = vsub.f32 %v495, %v499
        %v502 = vmul.f32 %v500, 1.442695
        %v503 = vpow.pop %v502
        %v504 = vmul.f32 %v501, 1.442695
        %v505 = vpow.pop %v504
        %506 = vadd.xlane.f32.xlu0 %v503
        %v507 = vpop.xlane.xlu0 %506
        %508 = vadd.xlane.f32.xlu0 %v505
        %v509 = vpop.xlane.xlu0 %508
        %v510 = vrcp.pop %v507
        %v511 = vrcp.pop %v509
        %v512 = vmul.f32 %v503, %v510
        %v513 = vmul.f32 %v505, %v511
        %v514 = vpack.c.bf16 %v513, %v512
        %515 = vmatprep.subr.bf16.mxu0 0
        %516 = vmatpush1.bf16.msra.mxu0 %v431
        %517 = vmatprep.subr.bf16.mxu0 0
        %518 = vmatpush1.bf16.msra.mxu0 %v432
        %519 = vmatprep.subr.bf16.mxu0 0
        %520 = vmatpush1.bf16.msra.mxu0 %v433
        %521 = vmatprep.subr.bf16.mxu0 0
        %522 = vmatpush1.bf16.msra.mxu0 %v434
        %523 = vmatprep.subr.bf16.mxu0 0
        %524 = vmatpush1.bf16.msra.mxu0 %v435
        %525 = vmatprep.subr.bf16.mxu0 0
        %526 = vmatpush1.bf16.msra.mxu0 %v436
        %527 = vmatprep.subr.bf16.mxu0 0
        %528 = vmatpush1.bf16.msra.mxu0 %v437
        %529 = vmatprep.subr.bf16.mxu0 0
        %530 = vmatpush1.bf16.msra.mxu0 %v438
        %531 = vmatprep.subr.bf16.mxu0 0
        %532 = vmatpush1.bf16.msra.mxu0 0
        %533 = vmatprep.subr.bf16.mxu0 0
        %534 = vmatpush1.bf16.msra.mxu0 0
        %535 = vmatprep.subr.bf16.mxu0 0
        %536 = vmatpush1.bf16.msra.mxu0 0
        %537 = vmatprep.subr.bf16.mxu0 0
        %538 = vmatpush1.bf16.msra.mxu0 0
        %539 = vmatprep.subr.bf16.mxu0 0
        %540 = vmatpush1.bf16.msra.mxu0 0
        %541 = vmatprep.subr.bf16.mxu0 0
        %542 = vmatpush1.bf16.msra.mxu0 0
        %543 = vmatprep.subr.bf16.mxu0 0
        %544 = vmatpush1.bf16.msra.mxu0 0
        %545 = vmatprep.subr.bf16.mxu0 0
        %546 = vmatpush1.bf16.msra.mxu0 0
        %547 = vmatprep.mubr.bf16.mxu0 0
        %548 = vmatmul.mubr.bf16.gmra.mrb[0].mxu0 %v514
        %v549 = vpop.f32.mrb[0].mxu0
        %v550 = vadd.f32 0.0, %v549
        %v551 = vpop.f32.mrb[0].mxu0
        %v552 = vpop.f32.mrb[0].mxu0
        %v553 = vadd.f32 0.0, %v552
        %v554 = vpop.f32.mrb[0].mxu0
        %555 = vdwg.mxu0
        %v556 = vpack.c.bf16 %v553, %v550
        %v557 = vld [vmem:[#allocation7] sm:$0xf]
        %v558 = vld [vmem:[#allocation7 + $0x4] sm:$0xf]
        %v559 = vld [vmem:[#allocation7 + $0x8] sm:$0xf]
        %v560 = vld [vmem:[#allocation7 + $0xc] sm:$0xf]
        %v561 = vld [vmem:[#allocation7 + $0x10] sm:$0xf]
        %v562 = vld [vmem:[#allocation7 + $0x14] sm:$0xf]
        %v563 = vld [vmem:[#allocation7 + $0x18] sm:$0xf]
        %v564 = vld [vmem:[#allocation7 + $0x1c] sm:$0xf]
        %v565 = vld [vmem:[#allocation7 + $0x20] sm:$0xf]
        %v566 = vld [vmem:[#allocation7 + $0x24] sm:$0xf]
        %v567 = vld [vmem:[#allocation7 + $0x28] sm:$0xf]
        %v568 = vld [vmem:[#allocation7 + $0x2c] sm:$0xf]
        %v569 = vld [vmem:[#allocation7 + $0x30] sm:$0xf]
        %v570 = vld [vmem:[#allocation7 + $0x34] sm:$0xf]
        %v571 = vld [vmem:[#allocation7 + $0x38] sm:$0xf]
        %v572 = vld [vmem:[#allocation7 + $0x3c] sm:$0xf]
        %v573 = vmul.f32 %v380, %v550
        %v574 = vmul.f32 %v381, %v553
        %v575 = vpack.c.bf16 %v574, %v573
        %s576 = scalar_lea.vmem [#allocation7], 64
        %v577 = vld [vmem:[%s576] sm:$0xf]
        %v578 = vld [vmem:[%s576 + $0x4] sm:$0xf]
        %v579 = vld [vmem:[%s576 + $0x8] sm:$0xf]
        %v580 = vld [vmem:[%s576 + $0xc] sm:$0xf]
        %v581 = vld [vmem:[%s576 + $0x10] sm:$0xf]
        %v582 = vld [vmem:[%s576 + $0x14] sm:$0xf]
        %v583 = vld [vmem:[%s576 + $0x18] sm:$0xf]
        %v584 = vld [vmem:[%s576 + $0x1c] sm:$0xf]
        %v585 = vld [vmem:[%s576 + $0x20] sm:$0xf]
        %v586 = vld [vmem:[%s576 + $0x24] sm:$0xf]
        %v587 = vld [vmem:[%s576 + $0x28] sm:$0xf]
        %v588 = vld [vmem:[%s576 + $0x2c] sm:$0xf]
        %v589 = vld [vmem:[%s576 + $0x30] sm:$0xf]
        %v590 = vld [vmem:[%s576 + $0x34] sm:$0xf]
        %v591 = vld [vmem:[%s576 + $0x38] sm:$0xf]
        %v592 = vld [vmem:[%s576 + $0x3c] sm:$0xf]
        %v609 = vunpack.c.l.b16 %v577
        %v610 = vunpack.c.l.b16 %v578
        %v611 = vunpack.c.l.b16 %v579
        %v612 = vunpack.c.l.b16 %v580
        %v613 = vunpack.c.l.b16 %v581
        %v614 = vunpack.c.l.b16 %v582
        %v615 = vunpack.c.l.b16 %v583
        %v616 = vunpack.c.l.b16 %v584
        %v617 = vunpack.c.l.b16 %v585
        %v618 = vunpack.c.l.b16 %v586
        %v619 = vunpack.c.l.b16 %v587
        %v620 = vunpack.c.l.b16 %v588
        %v621 = vunpack.c.l.b16 %v589
        %v622 = vunpack.c.l.b16 %v590
        %v623 = vunpack.c.l.b16 %v591
        %v624 = vunpack.c.l.b16 %v592
        %v625 = vpack.c.b16 %v610, %v609
        %v626 = vpack.c.b16 %v612, %v611
        %v627 = vpack.c.b16 %v614, %v613
        %v628 = vpack.c.b16 %v616, %v615
        %v629 = vpack.c.b16 %v618, %v617
        %v630 = vpack.c.b16 %v620, %v619
        %v631 = vpack.c.b16 %v622, %v621
        %v632 = vpack.c.b16 %v624, %v623
        %641 = vmatprep.subr.bf16.mxu0 0
        %642 = vmatpush1.bf16.msra.mxu0 %v625
        %643 = vmatprep.subr.bf16.mxu0 0
        %644 = vmatpush1.bf16.msra.mxu0 %v626
        %645 = vmatprep.subr.bf16.mxu0 0
        %646 = vmatpush1.bf16.msra.mxu0 %v627
        %647 = vmatprep.subr.bf16.mxu0 0
        %648 = vmatpush1.bf16.msra.mxu0 %v628
        %649 = vmatprep.subr.bf16.mxu0 0
        %650 = vmatpush1.bf16.msra.mxu0 %v629
        %651 = vmatprep.subr.bf16.mxu0 0
        %652 = vmatpush1.bf16.msra.mxu0 %v630
        %653 = vmatprep.subr.bf16.mxu0 0
        %654 = vmatpush1.bf16.msra.mxu0 %v631
        %655 = vmatprep.subr.bf16.mxu0 0
        %656 = vmatpush1.bf16.msra.mxu0 %v632
        %657 = vmatprep.subr.bf16.mxu0 0
        %658 = vmatpush1.bf16.msra.mxu0 0
        %659 = vmatprep.subr.bf16.mxu0 0
        %660 = vmatpush1.bf16.msra.mxu0 0
        %661 = vmatprep.subr.bf16.mxu0 0
        %662 = vmatpush1.bf16.msra.mxu0 0
        %663 = vmatprep.subr.bf16.mxu0 0
        %664 = vmatpush1.bf16.msra.mxu0 0
        %665 = vmatprep.subr.bf16.mxu0 0
        %666 = vmatpush1.bf16.msra.mxu0 0
        %667 = vmatprep.subr.bf16.mxu0 0
        %668 = vmatpush1.bf16.msra.mxu0 0
        %669 = vmatprep.subr.bf16.mxu0 0
        %670 = vmatpush1.bf16.msra.mxu0 0
        %671 = vmatprep.subr.bf16.mxu0 0
        %672 = vmatpush1.bf16.msra.mxu0 0
        %673 = vmatprep.mubr.bf16.mxu0 0
        %674 = vmatmul.mubr.bf16.gmra.mrb[0].mxu0 %v575
        %v675 = vpop.f32.mrb[0].mxu0
        %v676 = vadd.f32 0.0, %v675
        %v677 = vpop.f32.mrb[0].mxu0
        %v678 = vpop.f32.mrb[0].mxu0
        %v679 = vadd.f32 0.0, %v678
        %v680 = vpop.f32.mrb[0].mxu0
        %681 = vdwg.mxu0
        %v698 = vunpack.c.l.b16 %v557
        %v699 = vunpack.c.l.b16 %v558
        %v700 = vunpack.c.l.b16 %v559
        %v701 = vunpack.c.l.b16 %v560
        %v702 = vunpack.c.l.b16 %v561
        %v703 = vunpack.c.l.b16 %v562
        %v704 = vunpack.c.l.b16 %v563
        %v705 = vunpack.c.l.b16 %v564
        %v706 = vunpack.c.l.b16 %v565
        %v707 = vunpack.c.l.b16 %v566
        %v708 = vunpack.c.l.b16 %v567
        %v709 = vunpack.c.l.b16 %v568
        %v710 = vunpack.c.l.b16 %v569
        %v711 = vunpack.c.l.b16 %v570
        %v712 = vunpack.c.l.b16 %v571
        %v713 = vunpack.c.l.b16 %v572
        %v714 = vpack.c.b16 %v699, %v698
        %v715 = vpack.c.b16 %v701, %v700
        %v716 = vpack.c.b16 %v703, %v702
        %v717 = vpack.c.b16 %v705, %v704
        %v718 = vpack.c.b16 %v707, %v706
        %v719 = vpack.c.b16 %v709, %v708
        %v720 = vpack.c.b16 %v711, %v710
        %v721 = vpack.c.b16 %v713, %v712
        %730 = vmatprep.subr.bf16.mxu0 0
        %731 = vmatpush1.bf16.msra.mxu0 %v714
        %732 = vmatprep.subr.bf16.mxu0 0
        %733 = vmatpush1.bf16.msra.mxu0 %v715
        %734 = vmatprep.subr.bf16.mxu0 0
        %735 = vmatpush1.bf16.msra.mxu0 %v716
        %736 = vmatprep.subr.bf16.mxu0 0
        %737 = vmatpush1.bf16.msra.mxu0 %v717
        %738 = vmatprep.subr.bf16.mxu0 0
        %739 = vmatpush1.bf16.msra.mxu0 %v718
        %740 = vmatprep.subr.bf16.mxu0 0
        %741 = vmatpush1.bf16.msra.mxu0 %v719
        %742 = vmatprep.subr.bf16.mxu0 0
        %743 = vmatpush1.bf16.msra.mxu0 %v720
        %744 = vmatprep.subr.bf16.mxu0 0
        %745 = vmatpush1.bf16.msra.mxu0 %v721
        %746 = vmatprep.subr.bf16.mxu0 0
        %747 = vmatpush1.bf16.msra.mxu0 0
        %748 = vmatprep.subr.bf16.mxu0 0
        %749 = vmatpush1.bf16.msra.mxu0 0
        %750 = vmatprep.subr.bf16.mxu0 0
        %751 = vmatpush1.bf16.msra.mxu0 0
        %752 = vmatprep.subr.bf16.mxu0 0
        %753 = vmatpush1.bf16.msra.mxu0 0
        %754 = vmatprep.subr.bf16.mxu0 0
        %755 = vmatpush1.bf16.msra.mxu0 0
        %756 = vmatprep.subr.bf16.mxu0 0
        %757 = vmatpush1.bf16.msra.mxu0 0
        %758 = vmatprep.subr.bf16.mxu0 0
        %759 = vmatpush1.bf16.msra.mxu0 0
        %760 = vmatprep.subr.bf16.mxu0 0
        %761 = vmatpush1.bf16.msra.mxu0 0
        %762 = vmatprep.mubr.bf16.mxu0 0
        %763 = vmatmul.mubr.bf16.gmra.mrb[0].mxu0 %v556
        %v764 = vpop.f32.mrb[0].mxu0
        %v765 = vadd.f32 %v676, %v764
        %v766 = vpop.f32.mrb[0].mxu0
        %v767 = vpop.f32.mrb[0].mxu0
        %v768 = vadd.f32 %v679, %v767
        %v769 = vpop.f32.mrb[0].mxu0
        %770 = vdwg.mxu0
        %v771 = vld [vmem:[%s5] sm:$0x1]
        %v773 = vlaneseq
        %v774 = vshrl.u32 %v773, 7
        %v775 = vsub.s32 0, %v774
        %v776 = vrot.slane %v771, %v775
        %v778 = vadd.f32 %v765, %v776
        %v779 = vadd.f32 %v768, %v776
        %780 = vst [vmem:[%s352] sm:$0xff] %v778
        %781 = vst [vmem:[%s352 + $0x8] sm:$0xff] %v779
        %s782 = sand.u32 %s191, 1
        %s783 = scalar_lea.sflag [#allocation4], %s782
        %s784 = sand.u32 %s191, 1
        %s785 = smul.addr %s784, 16
        %s786 = scalar_lea.vmem [#allocation8], %s785
        // Predicated region
        $region57: #{tpu_custom_call.1} parent=43 // pred_check
          %p787 = pneg %p201
        $region58: #{tpu_custom_call.1} parent=43 // pred_check_branch
          %789 = sbr.rel (%p787) target = $region60
        $region59: #{tpu_custom_call.1} parent=43 // pred_region
          %s790 = smul.u32 2, %s31
          %s792 = ssub.s32 256, 256
          %793 = vsyncadd %s783, %s792
          %s794 = smul.addr %s30, 2
          %s795 = sadd.s32 %s790, %s794
          %s796 = smul.addr %s795, 128
          %s797 = scalar_lea.hbm %s6, %s796
          %s798 = sshll.u32 %s786, 4
          %s799 = int_to_ptr.vmem [resolvable:$true] %s798
          %804 = dma.vmem_to_hbm [thread:$0]  %s799, 256, %s797, %s783, 128, 128, 8
        $region60: #{tpu_custom_call.1} parent=43 // pred_fallthru
          _
      $region44: #{tpu_custom_call.1} parent=5 // pred_fallthru
        _
      %p805 = scmp.le.s32.totalorder 2, %s21
      // Predicated region
      $region61: #{tpu_custom_call.1} parent=5 // pred_check
        %p806 = pneg %p805
      $region62: #{tpu_custom_call.1} parent=5 // pred_check_branch
        %808 = sbr.rel (%p806) target = $region64
      $region63: #{tpu_custom_call.1} parent=5 // pred_region
        %s809 = ssub.s32 %s21, 2
        // Predicated region
        $region65: #{tpu_custom_call.1} parent=63 // pred_check
          %p810 = pneg %p207
        $region66: #{tpu_custom_call.1} parent=63 // pred_check_branch
          %812 = sbr.rel (%p810) target = $region68
        $region67: #{tpu_custom_call.1} parent=63 // pred_region
          %s813 = sand.u32 %s192, 1
          %s814 = scalar_lea.sflag [#allocation4], %s813
          %s815 = sand.u32 %s192, 1
          %s816 = smul.addr %s815, 16
          %s817 = scalar_lea.vmem [#allocation8], %s816
          %818 = dma.done %s814, 256
        $region68: #{tpu_custom_call.1} parent=63 // pred_fallthru
          _
      $region64: #{tpu_custom_call.1} parent=5 // pred_fallthru
        _
    $region6: #{tpu_custom_call.1} parent=1 // loop_footer
      %s25 = sadd.s32 1, %s21
    $region7: #{tpu_custom_call.1} parent=1 // loop_footer_branch
      %20 = sbr.rel target = $region3
    $region8: #{tpu_custom_call.1} parent=1 // loop_exit
      _
    %819 = vsyncpa [#allocation3], 1
    %s820 = scalar_lea.sflag [#allocation3], 1
    %821 = vsyncpa %s820, 1
    %822 = vsyncpa [#allocation6], 1
    %s823 = scalar_lea.sflag [#allocation6], 1
    %824 = vsyncpa %s823, 1
    %825 = vsyncpa [#allocation4], 1
    %s826 = scalar_lea.sflag [#allocation4], 1
    %827 = vsyncpa %s826, 1

</llo_original>
